<compile_context>
chip_gen: v6e
topology: v6e:2x2x1
jax: 0.10.0
libtpu: 0.0.40
codegen_flags: <defaults>
</compile_context>

<pallas_src>
import functools

import jax
import jax.numpy as jnp
from jax.experimental import pallas as pl
from jax.experimental.pallas import tpu as pltpu


# ---------------------------------------------------------------------------
# Kernel bodies
# ---------------------------------------------------------------------------

def _expand_width(x, e, out_dtype):
    """y[:, c] = x[:, c // s] via x @ E on the MXU.

    E is a 0/1 selection matrix (one nonzero per output column), so:
      * bf16 x: one bf16 matmul with f32 accumulation is bit-exact.
      * f32  x: split into 3 bf16 terms (exactly x1+x2+x3 == x) and sum three
        single-pass matmuls -- bit-exact, equivalent to Precision.HIGH but
        guaranteed to lower.
    Other dtypes are routed through f32 (exact for f16; ints with >24-bit
    magnitude would lose bits -- TODO(synk): dedicated integer path if needed).
    """
    if x.dtype == jnp.bfloat16:
        y = jnp.dot(x, e, preferred_element_type=jnp.float32)
    else:
        xf = x.astype(jnp.float32)
        x1 = xf.astype(jnp.bfloat16)
        r1 = xf - x1.astype(jnp.float32)
        x2 = r1.astype(jnp.bfloat16)
        x3 = (r1 - x2.astype(jnp.float32)).astype(jnp.bfloat16)
        y = (jnp.dot(x1, e, preferred_element_type=jnp.float32)
             + jnp.dot(x2, e, preferred_element_type=jnp.float32)
             + jnp.dot(x3, e, preferred_element_type=jnp.float32))
    # Cast BEFORE the height replication so the convert runs on the 1/s-size
    # array, not the s-times-larger broadcast result.
    return y.astype(out_dtype)


def _nearest_kernel_flat(x_ref, e_ref, o_ref, *, scale):
    """(tr, W) input tile -> (tr, S*W*S) flat output tile."""
    y = _expand_width(x_ref[...], e_ref[...], o_ref.dtype)   # (tr, W*S)
    ws = y.shape[-1]
    for a in range(scale):                                    # S row-copies
        o_ref[:, a * ws:(a + 1) * ws] = y


def _nearest_kernel_3d(x_ref, e_ref, o_ref, *, scale):
    """Width-tiled fallback: (tr, tw) input tile -> (tr, S, tw*S) tile."""
    del scale
    y = _expand_width(x_ref[...], e_ref[...], o_ref.dtype)    # (tr, tw*S)
    o_ref[...] = jnp.broadcast_to(y[:, None, :], o_ref.shape)


# ---------------------------------------------------------------------------
# Tiling / generation-aware policy
# ---------------------------------------------------------------------------

def _tpu_generation():
    try:
        kind = jax.devices()[0].device_kind.lower()
    except Exception:
        return None
    for g in (7, 6, 5, 4):
        if f"v{g}" in kind:
            return g
    return None


def _divisors(n):
    small, large = [], []
    d = 1
    while d * d <= n:
        if n % d == 0:
            small.append(d)
            if d != n // d:
                large.append(n // d)
        d += 1
    return small + large[::-1]


def _pick_row_tile(rows, per_row_bytes, budget, sub, min_steps=1):
    """Largest row tile dividing `rows`, multiple of the sublane granularity,
    whose (double-buffered in + out + intermediates) footprint fits `budget`.
    On v7x we additionally prefer tiles leaving >= min_steps grid steps so the
    'parallel' grid actually feeds both TensorCores."""
    cands = [t for t in _divisors(rows) if t % sub == 0]
    if not cands:
        return rows                        # full extent is always a legal block
    fitting = [t for t in cands if t * per_row_bytes <= budget]
    if not fitting:
        return cands[0]                    # budget is advisory; smallest legal tile
    if min_steps > 1:
        pref = [t for t in fitting if rows // t >= min_steps]
        if pref:
            return max(pref)
    return max(fitting)


# ---------------------------------------------------------------------------
# Wrapper
# ---------------------------------------------------------------------------

def upsample_nearest(x, scale=2, *, max_block_bytes=None, vmem_limit_bytes=None):
    """Nearest-neighbour upsampling of an NCHW tensor by an integer factor."""
    s = int(scale)
    assert s >= 1 and s == scale, "only integer scale factors are supported"
    n, c, h, w = x.shape
    if s == 1:
        return x

    rows = n * c * h
    x2 = x.reshape(rows, w)                     # free (contiguous) reshape
    itemsize = jnp.dtype(x.dtype).itemsize
    sub = max(8, 32 // itemsize)                # 8 (f32) / 16 (bf16) / 32 (int8)

    gen = _tpu_generation()
    if gen == 7:
        # 64 MiB VMEM, 2 TensorCores: modest blocks, keep >= 4 grid steps.
        default_budget, vmem_cap, min_steps = 5 << 20, 48 << 20, 4
    elif gen in (5, 6):
        # 128 MiB VMEM: big blocks amortize the ~0.35us per-step overhead.
        default_budget, vmem_cap, min_steps = 12 << 20, 96 << 20, 1
    else:
        default_budget, vmem_cap, min_steps = 6 << 20, 48 << 20, 1
    budget = default_budget if max_block_bytes is None else int(max_block_bytes)

    def per_row_flat(tw_):
        # 2x double-buffered input + 2x double-buffered flat output +
        # f32 matmul result + bf16-split temporaries.
        return (2 * tw_ * itemsize
                + 2 * s * s * tw_ * itemsize
                + 4 * s * tw_
                + 8 * tw_)

    use_width_tiling = (sub * per_row_flat(w) > budget
                        and w % 128 == 0 and w > 128)

    if not use_width_tiling:
        # ---------------- Fast path: full-width, flat lane-dense output -----
        tw = w
        per_row = per_row_flat(tw)
        tr = _pick_row_tile(rows, per_row, budget, sub, min_steps)

        wi = jnp.arange(tw, dtype=jnp.int32)[:, None]
        col = jnp.arange(tw * s, dtype=jnp.int32)[None, :]
        e = (col // s == wi).astype(jnp.bfloat16)              # (tw, tw*s), 0/1
        e_bytes = tw * tw * s * 2

        vmem_limit = vmem_limit_bytes or min(
            vmem_cap, max(32 << 20, int(1.5 * (tr * per_row + e_bytes)) + (2 << 20)))
        ce = pl.CostEstimate(
            flops=int(2 * rows * tw * w * s) * (1 if x.dtype == jnp.bfloat16 else 3),
            transcendentals=0,
            bytes_accessed=int(rows * w * itemsize * (1 + s * s) + e_bytes))

        out2 = pl.pallas_call(
            functools.partial(_nearest_kernel_flat, scale=s),
            out_shape=jax.ShapeDtypeStruct((rows, s * w * s), x.dtype),
            grid=(rows // tr,),
            in_specs=[
                pl.BlockSpec((tr, w), lambda i: (i, 0)),
                pl.BlockSpec((w, w * s), lambda i: (0, 0)),    # resident E
            ],
            out_specs=pl.BlockSpec((tr, s * w * s), lambda i: (i, 0)),
            compiler_params=pltpu.CompilerParams(
                dimension_semantics=("parallel",),
                vmem_limit_bytes=int(vmem_limit)),
            cost_estimate=ce,
        )(x2, e)
        # (R, S*W*S) -> (N, C, H*S, W*S): adjacent-dim merges only -> free.
        return out2.reshape(n, c, h * s, w * s)

    # ---------------- Fallback: width-tiled 3-D output (very wide W) --------
    tw = 128                                   # matches every generation's MXU
    padded_s = ((s + sub - 1) // sub) * sub    # sublane padding of the S dim
    per_row = (2 * tw * itemsize
               + 2 * padded_s * tw * s * itemsize
               + 4 * s * tw
               + 8 * tw)
    tr = _pick_row_tile(rows, per_row, budget, sub, min_steps)

    wi = jnp.arange(tw, dtype=jnp.int32)[:, None]
    col = jnp.arange(tw * s, dtype=jnp.int32)[None, :]
    e = (col // s == wi).astype(jnp.bfloat16)                  # (tw, tw*s), 0/1
    e_bytes = tw * tw * s * 2

    vmem_limit = vmem_limit_bytes or min(
        vmem_cap, max(32 << 20, int(1.5 * (tr * per_row + e_bytes)) + (2 << 20)))
    ce = pl.CostEstimate(
        flops=int(2 * rows * tw * w * s) * (1 if x.dtype == jnp.bfloat16 else 3),
        transcendentals=0,
        bytes_accessed=int(rows * w * itemsize * (1 + s * s) + e_bytes))

    out3 = pl.pallas_call(
        functools.partial(_nearest_kernel_3d, scale=s),
        out_shape=jax.ShapeDtypeStruct((rows, s, w * s), x.dtype),
        grid=(rows // tr, w // tw),
        in_specs=[
            pl.BlockSpec((tr, tw), lambda i, j: (i, j)),
            pl.BlockSpec((tw, tw * s), lambda i, j: (0, 0)),   # resident E
        ],
        out_specs=pl.BlockSpec((tr, s, tw * s), lambda i, j: (i, 0, j)),
        compiler_params=pltpu.CompilerParams(
            dimension_semantics=("parallel", "parallel"),
            vmem_limit_bytes=int(vmem_limit)),
        cost_estimate=ce,
    )(x2, e)
    # (R, S, W*S) -> (N, C, H*S, W*S): adjacent-dim merges only -> free.
    return out3.reshape(n, c, h * s, w * s)


def upsampling_forward(x, nch=None, pool=2, up_type="nearest"):
    """Forward of the PyTorch `UpSampling` module (defaults: pool=2, nearest)."""
    del nch  # only used by the 'conv' branch of the original module
    if up_type == "nearest":
        return upsample_nearest(x, pool)
    if up_type == "bilinear":
        # TODO(synk): bilinear (align_corners=True) upsampling not implemented as a Pallas kernel.
        raise NotImplementedError("bilinear upsampling not implemented")
    if up_type == "conv":
        # TODO(synk): ConvTranspose2d upsampling (learned weights) not implemented as a Pallas kernel.
        raise NotImplementedError("conv upsampling not implemented")
    raise ValueError(f"unknown upsampling type {up_type!r}")


if __name__ == "__main__":
    key = jax.random.PRNGKey(0)

    def ref_nearest(z, s):
        return jnp.repeat(jnp.repeat(z, s, axis=2), s, axis=3)

    # Primary case: module defaults (pool=2, nearest) on a small NCHW input.
    x = jax.random.normal(key, (2, 4, 16, 16), dtype=jnp.float32)
    y = jax.block_until_ready(upsampling_forward(x, pool=2, up_type="nearest"))
    assert y.shape == (2, 4, 32, 32)
    assert jnp.max(jnp.abs(y - ref_nearest(x, 2))) < 1e-6

    # Multi-step grid: small byte budget forces row tiling / pipelining.
    k2 = jax.random.fold_in(key, 1)
    x2 = jax.random.normal(k2, (2, 8, 64, 64), dtype=jnp.float32)
    y2 = jax.block_until_ready(upsample_nearest(x2, 2, max_block_bytes=64 * 1024))
    assert y2.shape == (2, 8, 128, 128)
    assert jnp.max(jnp.abs(y2 - ref_nearest(x2, 2))) < 1e-6

    # Width-tiled fallback path (tiny budget + 128-divisible wide W).
    k3 = jax.random.fold_in(key, 2)
    x3 = jax.random.normal(k3, (1, 2, 8, 256), dtype=jnp.float32)
    y3 = jax.block_until_ready(upsample_nearest(x3, 2, max_block_bytes=16 * 1024))
    assert y3.shape == (1, 2, 16, 512)
    assert jnp.max(jnp.abs(y3 - ref_nearest(x3, 2))) < 1e-6

    # Non-power-of-two scale factor.
    k4 = jax.random.fold_in(key, 3)
    x4 = jax.random.normal(k4, (1, 3, 8, 8), dtype=jnp.float32)
    y4 = jax.block_until_ready(upsample_nearest(x4, 3))
    assert y4.shape == (1, 3, 24, 24)
    assert jnp.max(jnp.abs(y4 - ref_nearest(x4, 3))) < 1e-6

    # bfloat16 I/O: native single-pass bf16 matmul path, still exact.
    xb = x.astype(jnp.bfloat16)
    yb = jax.block_until_ready(upsample_nearest(xb, 2))
    assert yb.dtype == jnp.bfloat16 and yb.shape == (2, 4, 32, 32)
    assert jnp.max(jnp.abs(yb.astype(jnp.float32)
                           - ref_nearest(xb, 2).astype(jnp.float32))) < 1e-6

    print("KERNEL_OK")
</pallas_src>

<mosaic_0001>
module attributes {stable_mosaic.version = 11 : i64} {
  func.func @_nearest_kernel_flat(%arg0: i32, %arg1: memref<128x16xf32, #tpu.memory_space<vmem>>, %arg2: memref<16x32xbf16, #tpu.memory_space<vmem>>, %arg3: memref<128x64xf32, #tpu.memory_space<vmem>>) attributes {dimension_semantics = [#tpu.dimension_semantics<parallel>], iteration_bounds = array<i64: 1>, scalar_prefetch = 0 : i64, scratch_operands = 0 : i64, tpu.core_type = #tpu.core_type<tc>, window_params = [{transform_indices = @transform_0, window_bounds = array<i64: 128, 16>}, {pipeline_mode = #tpu.pipeline_mode<synchronous>, transform_indices = @transform_1, window_bounds = array<i64: 16, 32>}, {transform_indices = @transform_2, window_bounds = array<i64: 128, 64>}]} {
    %c0 = arith.constant 0 : index
    %c0_0 = arith.constant 0 : index
    %0 = vector.load %arg1[%c0, %c0_0] : memref<128x16xf32, #tpu.memory_space<vmem>>, vector<128x16xf32>
    %c0_1 = arith.constant 0 : index
    %c0_2 = arith.constant 0 : index
    %1 = vector.load %arg2[%c0_1, %c0_2] : memref<16x32xbf16, #tpu.memory_space<vmem>>, vector<16x32xbf16>
    %2 = arith.truncf %0 : vector<128x16xf32> to vector<128x16xbf16>
    %3 = arith.extf %2 : vector<128x16xbf16> to vector<128x16xf32>
    %4 = arith.subf %0, %3 : vector<128x16xf32>
    %5 = arith.truncf %4 : vector<128x16xf32> to vector<128x16xbf16>
    %6 = arith.extf %5 : vector<128x16xbf16> to vector<128x16xf32>
    %7 = arith.subf %4, %6 : vector<128x16xf32>
    %8 = arith.truncf %7 : vector<128x16xf32> to vector<128x16xbf16>
    %cst = arith.constant dense<0.000000e+00> : vector<128x32xf32>
    %9 = tpu.matmul %2, %1, %cst {dimension_numbers = #tpu.dot_dimension_numbers<[1], [0], [0], [1], [0, 0, 1, 1], [], []>} : vector<128x16xbf16>, vector<16x32xbf16>, vector<128x32xf32> -> vector<128x32xf32>
    %cst_3 = arith.constant dense<0.000000e+00> : vector<128x32xf32>
    %10 = tpu.matmul %5, %1, %cst_3 {dimension_numbers = #tpu.dot_dimension_numbers<[1], [0], [0], [1], [0, 0, 1, 1], [], []>} : vector<128x16xbf16>, vector<16x32xbf16>, vector<128x32xf32> -> vector<128x32xf32>
    %11 = arith.addf %9, %10 : vector<128x32xf32>
    %cst_4 = arith.constant dense<0.000000e+00> : vector<128x32xf32>
    %12 = tpu.matmul %8, %1, %cst_4 {dimension_numbers = #tpu.dot_dimension_numbers<[1], [0], [0], [1], [0, 0, 1, 1], [], []>} : vector<128x16xbf16>, vector<16x32xbf16>, vector<128x32xf32> -> vector<128x32xf32>
    %13 = arith.addf %11, %12 : vector<128x32xf32>
    %c0_5 = arith.constant 0 : index
    %c0_6 = arith.constant 0 : index
    %14 = vector.load %arg3[%c0_5, %c0_6] : memref<128x64xf32, #tpu.memory_space<vmem>>, vector<128x32xf32>
    tpu.vector_store %arg3[%c0_5, %c0_6], %13 {strides = array<i32>} : memref<128x64xf32, #tpu.memory_space<vmem>>, vector<128x32xf32>,
    %c0_7 = arith.constant 0 : index
    %c32 = arith.constant 32 : index
    %15 = vector.load %arg3[%c0_7, %c32] : memref<128x64xf32, #tpu.memory_space<vmem>>, vector<128x32xf32>
    tpu.vector_store %arg3[%c0_7, %c32], %13 {strides = array<i32>} : memref<128x64xf32, #tpu.memory_space<vmem>>, vector<128x32xf32>,
    return
  }
  func.func @transform_0(%arg0: i32) -> (i32, i32) {
    %c0_i32 = arith.constant 0 : i32
    %c0_i32_0 = arith.constant 0 : i32
    return %arg0, %c0_i32 : i32, i32
  }
  func.func @transform_1(%arg0: i32) -> (i32, i32) {
    %c0_i32 = arith.constant 0 : i32
    %c0_i32_0 = arith.constant 0 : i32
    %c0_i32_1 = arith.constant 0 : i32
    return %c0_i32, %c0_i32_0 : i32, i32
  }
  func.func @transform_2(%arg0: i32) -> (i32, i32) {
    %c0_i32 = arith.constant 0 : i32
    %c0_i32_0 = arith.constant 0 : i32
    return %arg0, %c0_i32 : i32, i32
  }
}

</mosaic_0001>

<llo_original>
// kernel: tpu_custom_call.1
$region0: #{tpu_custom_call.1}
  #allocation0 [shape = 'u32[]', space=smem, size = 0x4, offset = 0x4, fixed_abs, tag = 'smem constant byte address 0x4 - core index']
  #allocation1 [shape = 'u32[144,128]{1,0:T(1,128)}', space=vmem, size = 0x12000, scoped, tag = 'internal scratch']
  %s0 = inlined_call_operand.vmem [shape: f32[128,16], index: 0, kind: input, shape index: {}]
  %s1 = inlined_call_operand.vmem [shape: bf16[16,32], index: 1, kind: input, shape index: {}]
  %s2 = inlined_call_operand.vmem [shape: f32[128,64], index: 2, kind: output, shape index: {}]
  %s3 = sld [smem:[#allocation0]]
  $region18: #{tpu_custom_call.1} parent=0
    _
  %s5 = ssub.s32 1, %s3
  %s6 = scalar_select 0, %s5, %s3
  // Predicated region
  $region2: #{tpu_custom_call.1} parent=0 // pred_check
    _
  $region3: #{tpu_custom_call.1} parent=0 // pred_check_branch
    %8 = sbr.rel (0) target = $region5
  $region4: #{tpu_custom_call.1} parent=0 // pred_region
    _
  $region5: #{tpu_custom_call.1} parent=0 // pred_fallthru
    _
  // Predicated region
  $region6: #{tpu_custom_call.1} parent=0 // pred_check
    _
  $region7: #{tpu_custom_call.1} parent=0 // pred_check_branch
    %10 = sbr.rel (0) target = $region9
  $region8: #{tpu_custom_call.1} parent=0 // pred_region
    _
  $region9: #{tpu_custom_call.1} parent=0 // pred_fallthru
    _
  %v12 = vld [vmem:[%s0] sm:$0xff]
  %v13 = vld [vmem:[%s0 + $0x8] sm:$0xff]
  %v14 = vld [vmem:[%s0 + $0x10] sm:$0xff]
  %v15 = vld [vmem:[%s0 + $0x18] sm:$0xff]
  %v16 = vld [vmem:[%s0 + $0x20] sm:$0xff]
  %v17 = vld [vmem:[%s0 + $0x28] sm:$0xff]
  %v18 = vld [vmem:[%s0 + $0x30] sm:$0xff]
  %v19 = vld [vmem:[%s0 + $0x38] sm:$0xff]
  %v20 = vld [vmem:[%s0 + $0x40] sm:$0xff]
  %v21 = vld [vmem:[%s0 + $0x48] sm:$0xff]
  %v22 = vld [vmem:[%s0 + $0x50] sm:$0xff]
  %v23 = vld [vmem:[%s0 + $0x58] sm:$0xff]
  %v24 = vld [vmem:[%s0 + $0x60] sm:$0xff]
  %v25 = vld [vmem:[%s0 + $0x68] sm:$0xff]
  %v26 = vld [vmem:[%s0 + $0x70] sm:$0xff]
  %v27 = vld [vmem:[%s0 + $0x78] sm:$0xff]
  %v28 = vld [vmem:[%s1] sm:$0xf]
  %v29 = vld [vmem:[%s1 + $0x4] sm:$0xf]
  %v30 = vpack.c.bf16 %v13, %v12
  %v31 = vpack.c.bf16 %v15, %v14
  %v32 = vpack.c.bf16 %v17, %v16
  %v33 = vpack.c.bf16 %v19, %v18
  %v34 = vpack.c.bf16 %v21, %v20
  %v35 = vpack.c.bf16 %v23, %v22
  %v36 = vpack.c.bf16 %v25, %v24
  %v37 = vpack.c.bf16 %v27, %v26
  %v38 = vunpack.c.l.bf16 %v30
  %v39 = vunpack.c.h.bf16 %v30
  %v40 = vunpack.c.l.bf16 %v31
  %v41 = vunpack.c.h.bf16 %v31
  %v42 = vunpack.c.l.bf16 %v32
  %v43 = vunpack.c.h.bf16 %v32
  %v44 = vunpack.c.l.bf16 %v33
  %v45 = vunpack.c.h.bf16 %v33
  %v46 = vunpack.c.l.bf16 %v34
  %v47 = vunpack.c.h.bf16 %v34
  %v48 = vunpack.c.l.bf16 %v35
  %v49 = vunpack.c.h.bf16 %v35
  %v50 = vunpack.c.l.bf16 %v36
  %v51 = vunpack.c.h.bf16 %v36
  %v52 = vunpack.c.l.bf16 %v37
  %v53 = vunpack.c.h.bf16 %v37
  %v54 = vsub.f32 %v12, %v38
  %v55 = vsub.f32 %v13, %v39
  %v56 = vsub.f32 %v14, %v40
  %v57 = vsub.f32 %v15, %v41
  %v58 = vsub.f32 %v16, %v42
  %v59 = vsub.f32 %v17, %v43
  %v60 = vsub.f32 %v18, %v44
  %v61 = vsub.f32 %v19, %v45
  %v62 = vsub.f32 %v20, %v46
  %v63 = vsub.f32 %v21, %v47
  %v64 = vsub.f32 %v22, %v48
  %v65 = vsub.f32 %v23, %v49
  %v66 = vsub.f32 %v24, %v50
  %v67 = vsub.f32 %v25, %v51
  %v68 = vsub.f32 %v26, %v52
  %v69 = vsub.f32 %v27, %v53
  %v70 = vpack.c.bf16 %v55, %v54
  %v71 = vpack.c.bf16 %v57, %v56
  %v72 = vpack.c.bf16 %v59, %v58
  %v73 = vpack.c.bf16 %v61, %v60
  %v74 = vpack.c.bf16 %v63, %v62
  %v75 = vpack.c.bf16 %v65, %v64
  %v76 = vpack.c.bf16 %v67, %v66
  %v77 = vpack.c.bf16 %v69, %v68
  %v78 = vunpack.c.l.bf16 %v70
  %v79 = vunpack.c.h.bf16 %v70
  %v80 = vunpack.c.l.bf16 %v71
  %v81 = vunpack.c.h.bf16 %v71
  %v82 = vunpack.c.l.bf16 %v72
  %v83 = vunpack.c.h.bf16 %v72
  %v84 = vunpack.c.l.bf16 %v73
  %v85 = vunpack.c.h.bf16 %v73
  %v86 = vunpack.c.l.bf16 %v74
  %v87 = vunpack.c.h.bf16 %v74
  %v88 = vunpack.c.l.bf16 %v75
  %v89 = vunpack.c.h.bf16 %v75
  %v90 = vunpack.c.l.bf16 %v76
  %v91 = vunpack.c.h.bf16 %v76
  %v92 = vunpack.c.l.bf16 %v77
  %v93 = vunpack.c.h.bf16 %v77
  %v94 = vsub.f32 %v54, %v78
  %v95 = vsub.f32 %v55, %v79
  %v96 = vsub.f32 %v56, %v80
  %v97 = vsub.f32 %v57, %v81
  %v98 = vsub.f32 %v58, %v82
  %v99 = vsub.f32 %v59, %v83
  %v100 = vsub.f32 %v60, %v84
  %v101 = vsub.f32 %v61, %v85
  %v102 = vsub.f32 %v62, %v86
  %v103 = vsub.f32 %v63, %v87
  %v104 = vsub.f32 %v64, %v88
  %v105 = vsub.f32 %v65, %v89
  %v106 = vsub.f32 %v66, %v90
  %v107 = vsub.f32 %v67, %v91
  %v108 = vsub.f32 %v68, %v92
  %v109 = vsub.f32 %v69, %v93
  %v110 = vpack.c.bf16 %v95, %v94
  %v111 = vpack.c.bf16 %v97, %v96
  %v112 = vpack.c.bf16 %v99, %v98
  %v113 = vpack.c.bf16 %v101, %v100
  %v114 = vpack.c.bf16 %v103, %v102
  %v115 = vpack.c.bf16 %v105, %v104
  %v116 = vpack.c.bf16 %v107, %v106
  %v117 = vpack.c.bf16 %v109, %v108
  %v120 = vunpack.c.l.b16 %v28
  %v121 = vunpack.c.l.b16 %v29
  %v122 = vpack.c.b16 %v121, %v120
  %vm124 = vcmask 130048
  %v126 = vsel %vm124, %v70, 0
  %v129 = vsel %vm124, %v71, 0
  %v132 = vsel %vm124, %v72, 0
  %v135 = vsel %vm124, %v73, 0
  %v138 = vsel %vm124, %v74, 0
  %v141 = vsel %vm124, %v75, 0
  %v144 = vsel %vm124, %v76, 0
  %v147 = vsel %vm124, %v77, 0
  %149 = vmatprep.subr.bf16.mxu0 0
  %150 = vmatpush1.bf16.msra.mxu0 0
  %151 = vmatprep.subr.bf16.mxu0 0
  %152 = vmatpush1.bf16.msra.mxu0 0
  %153 = vmatprep.subr.bf16.mxu0 0
  %154 = vmatpush1.bf16.msra.mxu0 0
  %155 = vmatprep.subr.bf16.mxu0 0
  %156 = vmatpush1.bf16.msra.mxu0 0
  %157 = vmatprep.subr.bf16.mxu0 0
  %158 = vmatpush1.bf16.msra.mxu0 0
  %159 = vmatprep.subr.bf16.mxu0 0
  %160 = vmatpush1.bf16.msra.mxu0 0
  %161 = vmatprep.subr.bf16.mxu0 0
  %162 = vmatpush1.bf16.msra.mxu0 0
  %163 = vmatprep.subr.bf16.mxu0 0
  %164 = vmatpush1.bf16.msra.mxu0 %v122
  %165 = vmatprep.subr.bf16.mxu0 0
  %166 = vmatpush2.bf16.msra.mxu0 0
  %167 = vmatprep.subr.bf16.mxu0 0
  %168 = vmatpush2.bf16.msra.mxu0 0
  %169 = vmatprep.subr.bf16.mxu0 0
  %170 = vmatpush2.bf16.msra.mxu0 0
  %171 = vmatprep.subr.bf16.mxu0 0
  %172 = vmatpush2.bf16.msra.mxu0 0
  %173 = vmatprep.subr.bf16.mxu0 0
  %174 = vmatpush2.bf16.msra.mxu0 0
  %175 = vmatprep.subr.bf16.mxu0 0
  %176 = vmatpush2.bf16.msra.mxu0 0
  %177 = vmatprep.subr.bf16.mxu0 0
  %178 = vmatpush2.bf16.msra.mxu0 0
  %179 = vmatprep.subr.bf16.mxu0 0
  %180 = vmatpush2.bf16.msra.mxu0 0
  %181 = vmatprep.mubr.bf16.mxu0 0
  %182 = vmatmul.mubr.bf16.gmra.mxu0 %v126
  %v183 = vpop.f32.mrf.mxu0
  %v184 = vadd.f32 0.0, %v183
  %v185 = vpop.f32.mrf.mxu0
  %v186 = vpop.f32.mrf.mxu0
  %v187 = vadd.f32 0.0, %v186
  %v188 = vpop.f32.mrf.mxu0
  %189 = vmatprep.mubr.bf16.mxu0 0
  %190 = vmatmul.mubr.bf16.gmra.mxu0 %v129
  %v191 = vpop.f32.mrf.mxu0
  %v192 = vadd.f32 0.0, %v191
  %v193 = vpop.f32.mrf.mxu0
  %v194 = vpop.f32.mrf.mxu0
  %v195 = vadd.f32 0.0, %v194
  %v196 = vpop.f32.mrf.mxu0
  %197 = vmatprep.mubr.bf16.mxu0 0
  %198 = vmatmul.mubr.bf16.gmra.mxu0 %v132
  %v199 = vpop.f32.mrf.mxu0
  %v200 = vadd.f32 0.0, %v199
  %v201 = vpop.f32.mrf.mxu0
  %v202 = vpop.f32.mrf.mxu0
  %v203 = vadd.f32 0.0, %v202
  %v204 = vpop.f32.mrf.mxu0
  %205 = vmatprep.mubr.bf16.mxu0 0
  %206 = vmatmul.mubr.bf16.gmra.mxu0 %v135
  %v207 = vpop.f32.mrf.mxu0
  %v208 = vadd.f32 0.0, %v207
  %v209 = vpop.f32.mrf.mxu0
  %v210 = vpop.f32.mrf.mxu0
  %v211 = vadd.f32 0.0, %v210
  %v212 = vpop.f32.mrf.mxu0
  %213 = vmatprep.mubr.bf16.mxu0 0
  %214 = vmatmul.mubr.bf16.gmra.mxu0 %v138
  %v215 = vpop.f32.mrf.mxu0
  %v216 = vadd.f32 0.0, %v215
  %v217 = vpop.f32.mrf.mxu0
  %v218 = vpop.f32.mrf.mxu0
  %v219 = vadd.f32 0.0, %v218
  %v220 = vpop.f32.mrf.mxu0
  %221 = vmatprep.mubr.bf16.mxu0 0
  %222 = vmatmul.mubr.bf16.gmra.mxu0 %v141
  %v223 = vpop.f32.mrf.mxu0
  %v224 = vadd.f32 0.0, %v223
  %v225 = vpop.f32.mrf.mxu0
  %v226 = vpop.f32.mrf.mxu0
  %v227 = vadd.f32 0.0, %v226
  %v228 = vpop.f32.mrf.mxu0
  %229 = vmatprep.mubr.bf16.mxu0 0
  %230 = vmatmul.mubr.bf16.gmra.mxu0 %v144
  %v231 = vpop.f32.mrf.mxu0
  %v232 = vadd.f32 0.0, %v231
  %v233 = vpop.f32.mrf.mxu0
  %v234 = vpop.f32.mrf.mxu0
  %v235 = vadd.f32 0.0, %v234
  %v236 = vpop.f32.mrf.mxu0
  %237 = vmatprep.mubr.bf16.mxu0 0
  %238 = vmatmul.mubr.bf16.gmra.mxu0 %v147
  %v239 = vpop.f32.mrf.mxu0
  %v240 = vadd.f32 0.0, %v239
  %v241 = vpop.f32.mrf.mxu0
  %v242 = vpop.f32.mrf.mxu0
  %v243 = vadd.f32 0.0, %v242
  %v244 = vpop.f32.mrf.mxu0
  %245 = vdwg.mxu0
  %v247 = vsel %vm124, %v30, 0
  %v250 = vsel %vm124, %v31, 0
  %v253 = vsel %vm124, %v32, 0
  %v256 = vsel %vm124, %v33, 0
  %v259 = vsel %vm124, %v34, 0
  %v262 = vsel %vm124, %v35, 0
  %v265 = vsel %vm124, %v36, 0
  %v268 = vsel %vm124, %v37, 0
  %270 = vmatprep.subr.bf16.mxu0 0
  %271 = vmatpush1.bf16.msra.mxu0 0
  %272 = vmatprep.subr.bf16.mxu0 0
  %273 = vmatpush1.bf16.msra.mxu0 0
  %274 = vmatprep.subr.bf16.mxu0 0
  %275 = vmatpush1.bf16.msra.mxu0 0
  %276 = vmatprep.subr.bf16.mxu0 0
  %277 = vmatpush1.bf16.msra.mxu0 0
  %278 = vmatprep.subr.bf16.mxu0 0
  %279 = vmatpush1.bf16.msra.mxu0 0
  %280 = vmatprep.subr.bf16.mxu0 0
  %281 = vmatpush1.bf16.msra.mxu0 0
  %282 = vmatprep.subr.bf16.mxu0 0
  %283 = vmatpush1.bf16.msra.mxu0 0
  %284 = vmatprep.subr.bf16.mxu0 0
  %285 = vmatpush1.bf16.msra.mxu0 %v122
  %286 = vmatprep.subr.bf16.mxu0 0
  %287 = vmatpush2.bf16.msra.mxu0 0
  %288 = vmatprep.subr.bf16.mxu0 0
  %289 = vmatpush2.bf16.msra.mxu0 0
  %290 = vmatprep.subr.bf16.mxu0 0
  %291 = vmatpush2.bf16.msra.mxu0 0
  %292 = vmatprep.subr.bf16.mxu0 0
  %293 = vmatpush2.bf16.msra.mxu0 0
  %294 = vmatprep.subr.bf16.mxu0 0
  %295 = vmatpush2.bf16.msra.mxu0 0
  %296 = vmatprep.subr.bf16.mxu0 0
  %297 = vmatpush2.bf16.msra.mxu0 0
  %298 = vmatprep.subr.bf16.mxu0 0
  %299 = vmatpush2.bf16.msra.mxu0 0
  %300 = vmatprep.subr.bf16.mxu0 0
  %301 = vmatpush2.bf16.msra.mxu0 0
  %302 = vmatprep.mubr.bf16.mxu0 0
  %303 = vmatmul.mubr.bf16.gmra.mxu0 %v247
  %v304 = vpop.f32.mrf.mxu0
  %v305 = vadd.f32 %v184, %v304
  %v306 = vpop.f32.mrf.mxu0
  %v307 = vpop.f32.mrf.mxu0
  %v308 = vadd.f32 %v187, %v307
  %v309 = vpop.f32.mrf.mxu0
  %310 = vmatprep.mubr.bf16.mxu0 0
  %311 = vmatmul.mubr.bf16.gmra.mxu0 %v250
  %v312 = vpop.f32.mrf.mxu0
  %v313 = vadd.f32 %v192, %v312
  %v314 = vpop.f32.mrf.mxu0
  %v315 = vpop.f32.mrf.mxu0
  %v316 = vadd.f32 %v195, %v315
  %v317 = vpop.f32.mrf.mxu0
  %318 = vmatprep.mubr.bf16.mxu0 0
  %319 = vmatmul.mubr.bf16.gmra.mxu0 %v253
  %v320 = vpop.f32.mrf.mxu0
  %v321 = vadd.f32 %v200, %v320
  %v322 = vpop.f32.mrf.mxu0
  %v323 = vpop.f32.mrf.mxu0
  %v324 = vadd.f32 %v203, %v323
  %v325 = vpop.f32.mrf.mxu0
  %326 = vmatprep.mubr.bf16.mxu0 0
  %327 = vmatmul.mubr.bf16.gmra.mxu0 %v256
  %v328 = vpop.f32.mrf.mxu0
  %v329 = vadd.f32 %v208, %v328
  %v330 = vpop.f32.mrf.mxu0
  %v331 = vpop.f32.mrf.mxu0
  %v332 = vadd.f32 %v211, %v331
  %v333 = vpop.f32.mrf.mxu0
  %334 = vmatprep.mubr.bf16.mxu0 0
  %335 = vmatmul.mubr.bf16.gmra.mxu0 %v259
  %v336 = vpop.f32.mrf.mxu0
  %v337 = vadd.f32 %v216, %v336
  %v338 = vpop.f32.mrf.mxu0
  %v339 = vpop.f32.mrf.mxu0
  %v340 = vadd.f32 %v219, %v339
  %v341 = vpop.f32.mrf.mxu0
  %342 = vmatprep.mubr.bf16.mxu0 0
  %343 = vmatmul.mubr.bf16.gmra.mxu0 %v262
  %v344 = vpop.f32.mrf.mxu0
  %v345 = vadd.f32 %v224, %v344
  %v346 = vpop.f32.mrf.mxu0
  %v347 = vpop.f32.mrf.mxu0
  %v348 = vadd.f32 %v227, %v347
  %v349 = vpop.f32.mrf.mxu0
  %350 = vmatprep.mubr.bf16.mxu0 0
  %351 = vmatmul.mubr.bf16.gmra.mxu0 %v265
  %v352 = vpop.f32.mrf.mxu0
  %v353 = vadd.f32 %v232, %v352
  %v354 = vpop.f32.mrf.mxu0
  %v355 = vpop.f32.mrf.mxu0
  %v356 = vadd.f32 %v235, %v355
  %v357 = vpop.f32.mrf.mxu0
  %358 = vmatprep.mubr.bf16.mxu0 0
  %359 = vmatmul.mubr.bf16.gmra.mxu0 %v268
  %v360 = vpop.f32.mrf.mxu0
  %v361 = vadd.f32 %v240, %v360
  %v362 = vpop.f32.mrf.mxu0
  %v363 = vpop.f32.mrf.mxu0
  %v364 = vadd.f32 %v243, %v363
  %v365 = vpop.f32.mrf.mxu0
  %366 = vdwg.mxu0
  %v368 = vsel %vm124, %v110, 0
  %v371 = vsel %vm124, %v111, 0
  %v374 = vsel %vm124, %v112, 0
  %v377 = vsel %vm124, %v113, 0
  %v380 = vsel %vm124, %v114, 0
  %v383 = vsel %vm124, %v115, 0
  %v386 = vsel %vm124, %v116, 0
  %v389 = vsel %vm124, %v117, 0
  %391 = vmatprep.subr.bf16.mxu0 0
  %392 = vmatpush1.bf16.msra.mxu0 0
  %393 = vmatprep.subr.bf16.mxu0 0
  %394 = vmatpush1.bf16.msra.mxu0 0
  %395 = vmatprep.subr.bf16.mxu0 0
  %396 = vmatpush1.bf16.msra.mxu0 0
  %397 = vmatprep.subr.bf16.mxu0 0
  %398 = vmatpush1.bf16.msra.mxu0 0
  %399 = vmatprep.subr.bf16.mxu0 0
  %400 = vmatpush1.bf16.msra.mxu0 0
  %401 = vmatprep.subr.bf16.mxu0 0
  %402 = vmatpush1.bf16.msra.mxu0 0
  %403 = vmatprep.subr.bf16.mxu0 0
  %404 = vmatpush1.bf16.msra.mxu0 0
  %405 = vmatprep.subr.bf16.mxu0 0
  %406 = vmatpush1.bf16.msra.mxu0 %v122
  %407 = vmatprep.subr.bf16.mxu0 0
  %408 = vmatpush2.bf16.msra.mxu0 0
  %409 = vmatprep.subr.bf16.mxu0 0
  %410 = vmatpush2.bf16.msra.mxu0 0
  %411 = vmatprep.subr.bf16.mxu0 0
  %412 = vmatpush2.bf16.msra.mxu0 0
  %413 = vmatprep.subr.bf16.mxu0 0
  %414 = vmatpush2.bf16.msra.mxu0 0
  %415 = vmatprep.subr.bf16.mxu0 0
  %416 = vmatpush2.bf16.msra.mxu0 0
  %417 = vmatprep.subr.bf16.mxu0 0
  %418 = vmatpush2.bf16.msra.mxu0 0
  %419 = vmatprep.subr.bf16.mxu0 0
  %420 = vmatpush2.bf16.msra.mxu0 0
  %421 = vmatprep.subr.bf16.mxu0 0
  %422 = vmatpush2.bf16.msra.mxu0 0
  %423 = vmatprep.mubr.bf16.mxu0 0
  %424 = vmatmul.mubr.bf16.gmra.mxu0 %v368
  %v425 = vpop.f32.mrf.mxu0
  %v426 = vadd.f32 0.0, %v425
  %v427 = vpop.f32.mrf.mxu0
  %v428 = vpop.f32.mrf.mxu0
  %v429 = vadd.f32 0.0, %v428
  %v430 = vpop.f32.mrf.mxu0
  %431 = vmatprep.mubr.bf16.mxu0 0
  %432 = vmatmul.mubr.bf16.gmra.mxu0 %v371
  %v433 = vpop.f32.mrf.mxu0
  %v434 = vadd.f32 0.0, %v433
  %v435 = vpop.f32.mrf.mxu0
  %v436 = vpop.f32.mrf.mxu0
  %v437 = vadd.f32 0.0, %v436
  %v438 = vpop.f32.mrf.mxu0
  %439 = vmatprep.mubr.bf16.mxu0 0
  %440 = vmatmul.mubr.bf16.gmra.mxu0 %v374
  %v441 = vpop.f32.mrf.mxu0
  %v442 = vadd.f32 0.0, %v441
  %v443 = vpop.f32.mrf.mxu0
  %v444 = vpop.f32.mrf.mxu0
  %v445 = vadd.f32 0.0, %v444
  %v446 = vpop.f32.mrf.mxu0
  %447 = vmatprep.mubr.bf16.mxu0 0
  %448 = vmatmul.mubr.bf16.gmra.mxu0 %v377
  %v449 = vpop.f32.mrf.mxu0
  %v450 = vadd.f32 0.0, %v449
  %v451 = vpop.f32.mrf.mxu0
  %v452 = vpop.f32.mrf.mxu0
  %v453 = vadd.f32 0.0, %v452
  %v454 = vpop.f32.mrf.mxu0
  %455 = vmatprep.mubr.bf16.mxu0 0
  %456 = vmatmul.mubr.bf16.gmra.mxu0 %v380
  %v457 = vpop.f32.mrf.mxu0
  %v458 = vadd.f32 0.0, %v457
  %v459 = vpop.f32.mrf.mxu0
  %v460 = vpop.f32.mrf.mxu0
  %v461 = vadd.f32 0.0, %v460
  %v462 = vpop.f32.mrf.mxu0
  %463 = vmatprep.mubr.bf16.mxu0 0
  %464 = vmatmul.mubr.bf16.gmra.mxu0 %v383
  %v465 = vpop.f32.mrf.mxu0
  %v466 = vadd.f32 0.0, %v465
  %v467 = vpop.f32.mrf.mxu0
  %v468 = vpop.f32.mrf.mxu0
  %v469 = vadd.f32 0.0, %v468
  %v470 = vpop.f32.mrf.mxu0
  %471 = vmatprep.mubr.bf16.mxu0 0
  %472 = vmatmul.mubr.bf16.gmra.mxu0 %v386
  %v473 = vpop.f32.mrf.mxu0
  %v474 = vadd.f32 0.0, %v473
  %v475 = vpop.f32.mrf.mxu0
  %v476 = vpop.f32.mrf.mxu0
  %v477 = vadd.f32 0.0, %v476
  %v478 = vpop.f32.mrf.mxu0
  %479 = vmatprep.mubr.bf16.mxu0 0
  %480 = vmatmul.mubr.bf16.gmra.mxu0 %v389
  %v481 = vpop.f32.mrf.mxu0
  %v482 = vadd.f32 0.0, %v481
  %v483 = vpop.f32.mrf.mxu0
  %v484 = vpop.f32.mrf.mxu0
  %v485 = vadd.f32 0.0, %v484
  %v486 = vpop.f32.mrf.mxu0
  %487 = vdwg.mxu0
  %v488 = vadd.f32 %v305, %v426
  %v489 = vadd.f32 %v308, %v429
  %v490 = vadd.f32 %v313, %v434
  %v491 = vadd.f32 %v316, %v437
  %v492 = vadd.f32 %v321, %v442
  %v493 = vadd.f32 %v324, %v445
  %v494 = vadd.f32 %v329, %v450
  %v495 = vadd.f32 %v332, %v453
  %v496 = vadd.f32 %v337, %v458
  %v497 = vadd.f32 %v340, %v461
  %v498 = vadd.f32 %v345, %v466
  %v499 = vadd.f32 %v348, %v469
  %v500 = vadd.f32 %v353, %v474
  %v501 = vadd.f32 %v356, %v477
  %v502 = vadd.f32 %v361, %v482
  %v503 = vadd.f32 %v364, %v485
  %vm504 = vcmask 261120
  %505 = vst.msk [vmem:[%s2] sm:$0xff] %vm504, %v488
  %506 = vst.msk [vmem:[%s2 + $0x8] sm:$0xff] %vm504, %v489
  %507 = vst.msk [vmem:[%s2 + $0x10] sm:$0xff] %vm504, %v490
  %508 = vst.msk [vmem:[%s2 + $0x18] sm:$0xff] %vm504, %v491
  %509 = vst.msk [vmem:[%s2 + $0x20] sm:$0xff] %vm504, %v492
  %510 = vst.msk [vmem:[%s2 + $0x28] sm:$0xff] %vm504, %v493
  %511 = vst.msk [vmem:[%s2 + $0x30] sm:$0xff] %vm504, %v494
  %512 = vst.msk [vmem:[%s2 + $0x38] sm:$0xff] %vm504, %v495
  %513 = vst.msk [vmem:[%s2 + $0x40] sm:$0xff] %vm504, %v496
  %514 = vst.msk [vmem:[%s2 + $0x48] sm:$0xff] %vm504, %v497
  %515 = vst.msk [vmem:[%s2 + $0x50] sm:$0xff] %vm504, %v498
  %516 = vst.msk [vmem:[%s2 + $0x58] sm:$0xff] %vm504, %v499
  %517 = vst.msk [vmem:[%s2 + $0x60] sm:$0xff] %vm504, %v500
  %518 = vst.msk [vmem:[%s2 + $0x68] sm:$0xff] %vm504, %v501
  %519 = vst.msk [vmem:[%s2 + $0x70] sm:$0xff] %vm504, %v502
  %520 = vst.msk [vmem:[%s2 + $0x78] sm:$0xff] %vm504, %v503
  %537 = vrot.lane.b32.xlu0 %v488, 32
  %v538 = vpop.permute.xlu0 %537
  %539 = vrot.lane.b32.xlu0 %v489, 32
  %v540 = vpop.permute.xlu0 %539
  %541 = vrot.lane.b32.xlu0 %v490, 32
  %v542 = vpop.permute.xlu0 %541
  %543 = vrot.lane.b32.xlu0 %v491, 32
  %v544 = vpop.permute.xlu0 %543
  %545 = vrot.lane.b32.xlu0 %v492, 32
  %v546 = vpop.permute.xlu0 %545
  %547 = vrot.lane.b32.xlu0 %v493, 32
  %v548 = vpop.permute.xlu0 %547
  %549 = vrot.lane.b32.xlu0 %v494, 32
  %v550 = vpop.permute.xlu0 %549
  %551 = vrot.lane.b32.xlu0 %v495, 32
  %v552 = vpop.permute.xlu0 %551
  %553 = vrot.lane.b32.xlu0 %v496, 32
  %v554 = vpop.permute.xlu0 %553
  %555 = vrot.lane.b32.xlu0 %v497, 32
  %v556 = vpop.permute.xlu0 %555
  %557 = vrot.lane.b32.xlu0 %v498, 32
  %v558 = vpop.permute.xlu0 %557
  %559 = vrot.lane.b32.xlu0 %v499, 32
  %v560 = vpop.permute.xlu0 %559
  %561 = vrot.lane.b32.xlu0 %v500, 32
  %v562 = vpop.permute.xlu0 %561
  %563 = vrot.lane.b32.xlu0 %v501, 32
  %v564 = vpop.permute.xlu0 %563
  %565 = vrot.lane.b32.xlu0 %v502, 32
  %v566 = vpop.permute.xlu0 %565
  %567 = vrot.lane.b32.xlu0 %v503, 32
  %v568 = vpop.permute.xlu0 %567
  %vm585 = vcmask 523520
  %586 = vst.msk [vmem:[%s2] sm:$0xff] %vm585, %v538
  %587 = vst.msk [vmem:[%s2 + $0x8] sm:$0xff] %vm585, %v540
  %588 = vst.msk [vmem:[%s2 + $0x10] sm:$0xff] %vm585, %v542
  %589 = vst.msk [vmem:[%s2 + $0x18] sm:$0xff] %vm585, %v544
  %590 = vst.msk [vmem:[%s2 + $0x20] sm:$0xff] %vm585, %v546
  %591 = vst.msk [vmem:[%s2 + $0x28] sm:$0xff] %vm585, %v548
  %592 = vst.msk [vmem:[%s2 + $0x30] sm:$0xff] %vm585, %v550
  %593 = vst.msk [vmem:[%s2 + $0x38] sm:$0xff] %vm585, %v552
  %594 = vst.msk [vmem:[%s2 + $0x40] sm:$0xff] %vm585, %v554
  %595 = vst.msk [vmem:[%s2 + $0x48] sm:$0xff] %vm585, %v556
  %596 = vst.msk [vmem:[%s2 + $0x50] sm:$0xff] %vm585, %v558
  %597 = vst.msk [vmem:[%s2 + $0x58] sm:$0xff] %vm585, %v560
  %598 = vst.msk [vmem:[%s2 + $0x60] sm:$0xff] %vm585, %v562
  %599 = vst.msk [vmem:[%s2 + $0x68] sm:$0xff] %vm585, %v564
  %600 = vst.msk [vmem:[%s2 + $0x70] sm:$0xff] %vm585, %v566
  %601 = vst.msk [vmem:[%s2 + $0x78] sm:$0xff] %vm585, %v568
  // Predicated region
  $region10: #{tpu_custom_call.1} parent=0 // pred_check
    _
  $region11: #{tpu_custom_call.1} parent=0 // pred_check_branch
    %603 = sbr.rel (0) target = $region13
  $region12: #{tpu_custom_call.1} parent=0 // pred_region
    _
  $region13: #{tpu_custom_call.1} parent=0 // pred_fallthru
    _
  // Predicated region
  $region14: #{tpu_custom_call.1} parent=0 // pred_check
    _
  $region15: #{tpu_custom_call.1} parent=0 // pred_check_branch
    %605 = sbr.rel (0) target = $region17
  $region16: #{tpu_custom_call.1} parent=0 // pred_region
    _
  $region17: #{tpu_custom_call.1} parent=0 // pred_fallthru
    _

</llo_original>
